<compile_context>
chip_gen: v5e
topology: v5e:2x2
jax: 0.10.0
libtpu: 0.0.40
codegen_flags: <defaults>
</compile_context>

<pallas_src>
import functools

import jax
import jax.numpy as jnp
from jax import lax
from jax.experimental import pallas as pl
from jax.experimental.pallas import tpu as pltpu


def _round_up(x, k):
    return (x + k - 1) // k * k


def _block_bytes(rows, cols, itemsize):
    # VMEM tiles are (8, 128); account for layout padding in the estimate.
    return _round_up(max(rows, 1), 8) * _round_up(max(cols, 1), 128) * itemsize


def _vmem_budget_and_limit():
    """Generation-aware VMEM sizing (v5e/v6e: 128 MiB physical, v7x: 64 MiB)."""
    try:
        cap = int(pltpu.get_tpu_info().vmem_capacity_bytes)
    except Exception:
        cap = 64 * 1024 * 1024  # conservative fallback (v7x-sized)
    limit = max(16 * 1024 * 1024, min(int(cap * 0.75), cap - (4 << 20)))
    budget = int(limit * 0.6)   # per-step working-set target (leave pipeline headroom)
    return budget, limit


def _cov_pool_mu_kernel(f_ref, o_ref, *, n, inv_t, t_rem, mask_t):
    bblk = f_ref.shape[0]
    t_block = f_ref.shape[2]
    t_idx = pl.program_id(1)
    last_t = pl.num_programs(1) - 1

    # Output block doubles as the f32 accumulator (resident across the T axis).
    @pl.when(t_idx == 0)
    def _init():
        o_ref[...] = jnp.zeros_like(o_ref)

    def accumulate(f_blk):
        # Raw second moment of this T chunk: out[b,i,j] += sum_t f[b,i,t] f[b,j,t].
        # T contraction expressed directly (no transpose / no staging copy), f32 acc.
        xx = lax.dot_general(
            f_blk, f_blk,
            dimension_numbers=(((2,), (2,)), ((0,), (0,))),
            preferred_element_type=jnp.float32,
        )                                                    # (bblk, n, n) f32
        s = jnp.sum(f_blk.astype(jnp.float32), axis=-1)      # (bblk, n) row sums (XLU)
        o_ref[:, :n, :n] += xx
        o_ref[:, :n, n:n + 1] += s[:, :, None]               # mean column (pre-scale)
        o_ref[:, n:n + 1, :n] += s[:, None, :]               # mean row    (pre-scale)

    if mask_t:
        # Only the final T tile is partial; full tiles take the unmasked path.
        @pl.when(t_idx != last_t)
        def _full_tile():
            accumulate(f_ref[...])

        @pl.when(t_idx == last_t)
        def _partial_tile():
            col = lax.broadcasted_iota(jnp.int32, (1, 1, t_block), 2)
            f_blk = f_ref[...]
            accumulate(jnp.where(col < t_rem, f_blk, jnp.zeros_like(f_blk)))
    else:
        accumulate(f_ref[...])

    @pl.when(t_idx == last_t)
    def _finalize():
        # Single 1/T scale on the tiny resident block; corner is exactly 1.
        o_ref[...] = o_ref[...] * inv_t
        o_ref[:, n:n + 1, n:n + 1] = jnp.ones((bblk, 1, 1), o_ref.dtype)


def cov_pool_mean(f, reg_mode="mle", *, b_block=None, t_block=None):
    """f: (B, n, T) -> (B, 1, n+1, n+1) covariance + mean SPD embedding."""
    if reg_mode != "mle":
        # TODO(synk): 'add_id' / 'adjust_eig' regularizers need an eigendecomposition; not implemented.
        raise NotImplementedError("only reg_mode='mle' is implemented")

    B, n, T = f.shape
    m = n + 1
    m_sub = _round_up(m, 8)       # sublane-aligned output rows
    m_pad = _round_up(m, 128)     # lane-dense output columns (dense vst)
    itemsize = jnp.dtype(f.dtype).itemsize
    budget, vmem_limit = _vmem_budget_and_limit()

    def per_batch_vmem(tb):
        vbytes = 2 * _block_bytes(n, tb, itemsize)      # double-buffered f input block
        vbytes += 2 * _block_bytes(m_sub, m_pad, 4)     # resident f32 output/accumulator
        return vbytes

    # ---- T tiling: biggest tile that fits (full T preferred; divisors of T preferred) ----
    if t_block is None:
        cands = sorted({c for c in (T, 8192, 4096, 2048, 1024, 512, 256, 128)
                        if 0 < c <= T}, reverse=True)
        fitting = [c for c in cands if per_batch_vmem(c) <= budget] or [cands[-1]]
        divs = [c for c in fitting if T % c == 0]
        t_block = divs[0] if (divs and divs[0] >= fitting[0] // 2) else fitting[0]
    t_block = int(min(t_block, T))
    assert t_block == T or t_block % 128 == 0, "t_block must be T or a multiple of 128"

    num_t = pl.cdiv(T, t_block)
    mask_t = num_t * t_block != T                 # only the last T tile needs masking
    t_rem = T - (num_t - 1) * t_block             # valid columns of that last tile

    # ---- batch blocking: bounded only by the VMEM budget; keep >=2 parallel blocks ----
    if b_block is None:
        b_block = max(1, budget // max(per_batch_vmem(t_block), 1))
        if B >= 2:
            b_block = min(b_block, (B + 1) // 2)  # both v7x TensorCores get batch work
    b_block = max(1, min(int(b_block), B))
    num_b = pl.cdiv(B, b_block)

    kernel = functools.partial(
        _cov_pool_mu_kernel, n=n, inv_t=1.0 / T, t_rem=t_rem, mask_t=mask_t,
    )

    cost = pl.CostEstimate(
        flops=2 * B * n * n * T + 2 * B * n * T,
        transcendentals=0,
        bytes_accessed=B * n * T * itemsize + B * m_sub * m_pad * 4,
    )

    out_f32 = pl.pallas_call(
        kernel,
        out_shape=jax.ShapeDtypeStruct((B, m_sub, m_pad), jnp.float32),
        grid_spec=pltpu.PrefetchScalarGridSpec(
            num_scalar_prefetch=0,
            grid=(num_b, num_t),
            in_specs=[pl.BlockSpec((b_block, n, t_block), lambda b, t: (b, 0, t))],
            out_specs=pl.BlockSpec((b_block, m_sub, m_pad), lambda b, t: (b, 0, 0)),
        ),
        compiler_params=pltpu.CompilerParams(
            dimension_semantics=("parallel", "arbitrary"),
            vmem_limit_bytes=vmem_limit,
        ),
        cost_estimate=cost,
    )(f)

    # Strip layout padding, cast once back to the input dtype, add channel axis.
    out = out_f32[:, :m, :m].astype(f.dtype)
    return out[:, None, :, :]


def _reference(f):
    """Pure-JAX reference matching the PyTorch forward (mle, alpha=1)."""
    B, n, T = f.shape
    f32 = f.astype(jnp.float32)
    mu = jnp.mean(f32, axis=-1, keepdims=True)               # (B, n, 1)
    fc = f32 - mu
    cov = jnp.einsum("bnt,bmt->bnm", fc, fc) / T             # (B, n, n)
    x = cov + jnp.einsum("bni,bmi->bnm", mu, mu)             # Cov + mu mu^T
    top = jnp.concatenate([x, mu], axis=2)                   # (B, n, n+1)
    bot = jnp.concatenate(
        [jnp.transpose(mu, (0, 2, 1)), jnp.ones((B, 1, 1), jnp.float32)], axis=2
    )                                                        # (B, 1, n+1)
    return jnp.concatenate([top, bot], axis=1)[:, None, :, :].astype(f.dtype)


if __name__ == "__main__":
    key = jax.random.PRNGKey(0)
    k1, k2, k3 = jax.random.split(key, 3)

    # Case 1: module-sized input (batch=2, n=4, T=16); single T step, auto tiling.
    f1 = jax.random.normal(k1, (2, 4, 16), dtype=jnp.float32)
    out1 = jax.block_until_ready(cov_pool_mean(f1, reg_mode="mle"))
    ref1 = _reference(f1)
    assert out1.shape == (2, 1, 5, 5), out1.shape
    assert jnp.allclose(out1, ref1, atol=1e-4, rtol=1e-4), "case1 mismatch vs reference"

    # Case 2: exercises T tiling + last-tile-only masking + partial batch block.
    f2 = jax.random.normal(k2, (3, 12, 300), dtype=jnp.float32)
    out2 = jax.block_until_ready(cov_pool_mean(f2, b_block=2, t_block=128))
    ref2 = _reference(f2)
    assert out2.shape == (3, 1, 13, 13), out2.shape
    assert jnp.allclose(out2, ref2, atol=1e-3, rtol=1e-3), "case2 mismatch vs reference"

    # Case 3: bf16 input -> f32 accumulation in the output block, cast in the wrapper.
    f3 = jax.random.normal(k3, (2, 8, 64), dtype=jnp.bfloat16)
    out3 = jax.block_until_ready(cov_pool_mean(f3))
    ref3 = _reference(f3)
    assert out3.shape == (2, 1, 9, 9), out3.shape
    assert jnp.allclose(out3.astype(jnp.float32), ref3.astype(jnp.float32),
                        atol=5e-2, rtol=5e-2), "case3 mismatch vs reference"

    print("KERNEL_OK")
</pallas_src>

<mosaic_0001>
module attributes {stable_mosaic.version = 11 : i64} {
  func.func @_cov_pool_mu_kernel(%arg0: i32, %arg1: i32, %arg2: memref<1x4x16xf32, #tpu.memory_space<vmem>>, %arg3: memref<1x8x128xf32, #tpu.memory_space<vmem>>) attributes {dimension_semantics = [#tpu.dimension_semantics<parallel>, #tpu.dimension_semantics<arbitrary>], iteration_bounds = array<i64: 2, 1>, scalar_prefetch = 0 : i64, scratch_operands = 0 : i64, tpu.core_type = #tpu.core_type<tc>, window_params = [{transform_indices = @transform_0, window_bounds = array<i64: 1, 4, 16>}, {transform_indices = @transform_1, window_bounds = array<i64: 1, 8, 128>}]} {
    %c0_i32 = arith.constant 0 : i32
    %0 = arith.cmpi eq, %arg1, %c0_i32 : i32
    %1 = arith.extui %0 : i1 to i32
    %c0_i32_0 = arith.constant 0 : i32
    %2 = arith.cmpi ne, %1, %c0_i32_0 : i32
    scf.if %2 {
      %cst_23 = arith.constant 0.000000e+00 : f32
      %20 = vector.broadcast %cst_23 : f32 to vector<1x8x128xf32>
      %c0_24 = arith.constant 0 : index
      %c0_25 = arith.constant 0 : index
      %c0_26 = arith.constant 0 : index
      %21 = vector.load %arg3[%c0_24, %c0_25, %c0_26] : memref<1x8x128xf32, #tpu.memory_space<vmem>>, vector<1x8x128xf32>
      tpu.vector_store %arg3[%c0_24, %c0_25, %c0_26], %20 {strides = array<i32>} : memref<1x8x128xf32, #tpu.memory_space<vmem>>, vector<1x8x128xf32>,
    } else {
    }
    %c0 = arith.constant 0 : index
    %c0_1 = arith.constant 0 : index
    %c0_2 = arith.constant 0 : index
    %3 = vector.load %arg2[%c0, %c0_1, %c0_2] : memref<1x4x16xf32, #tpu.memory_space<vmem>>, vector<1x4x16xf32>
    %cst = arith.constant dense<0.000000e+00> : vector<1x4x4xf32>
    %4 = tpu.matmul %3, %3, %cst {dimension_numbers = #tpu.dot_dimension_numbers<[2], [2], [1], [1], [0, 0, 0, 1, 1, 1], [0], [0]>} : vector<1x4x16xf32>, vector<1x4x16xf32>, vector<1x4x4xf32> -> vector<1x4x4xf32>
    %cst_3 = arith.constant dense<0.000000e+00> : vector<1x4xf32>
    %5 = vector.multi_reduction <add>, %3, %cst_3 [2] : vector<1x4x16xf32> to vector<1x4xf32>
    %c0_4 = arith.constant 0 : index
    %c0_5 = arith.constant 0 : index
    %c0_6 = arith.constant 0 : index
    %6 = vector.load %arg3[%c0_4, %c0_5, %c0_6] : memref<1x8x128xf32, #tpu.memory_space<vmem>>, vector<1x4x4xf32>
    %7 = arith.addf %6, %4 : vector<1x4x4xf32>
    %c0_7 = arith.constant 0 : index
    %c0_8 = arith.constant 0 : index
    %c0_9 = arith.constant 0 : index
    %8 = vector.load %arg3[%c0_7, %c0_8, %c0_9] : memref<1x8x128xf32, #tpu.memory_space<vmem>>, vector<1x4x4xf32>
    tpu.vector_store %arg3[%c0_7, %c0_8, %c0_9], %7 {strides = array<i32>} : memref<1x8x128xf32, #tpu.memory_space<vmem>>, vector<1x4x4xf32>,
    %c0_10 = arith.constant 0 : index
    %c0_11 = arith.constant 0 : index
    %c4 = arith.constant 4 : index
    %9 = vector.load %arg3[%c0_10, %c0_11, %c4] : memref<1x8x128xf32, #tpu.memory_space<vmem>>, vector<1x4x1xf32>
    %10 = vector.shape_cast %5 : vector<1x4xf32> to vector<1x4x1xf32>
    %11 = arith.addf %9, %10 : vector<1x4x1xf32>
    %c0_12 = arith.constant 0 : index
    %c0_13 = arith.constant 0 : index
    %c4_14 = arith.constant 4 : index
    %12 = vector.load %arg3[%c0_12, %c0_13, %c4_14] : memref<1x8x128xf32, #tpu.memory_space<vmem>>, vector<1x4x1xf32>
    tpu.vector_store %arg3[%c0_12, %c0_13, %c4_14], %11 {strides = array<i32>} : memref<1x8x128xf32, #tpu.memory_space<vmem>>, vector<1x4x1xf32>,
    %c0_15 = arith.constant 0 : index
    %c4_16 = arith.constant 4 : index
    %c0_17 = arith.constant 0 : index
    %13 = vector.load %arg3[%c0_15, %c4_16, %c0_17] : memref<1x8x128xf32, #tpu.memory_space<vmem>>, vector<1x1x4xf32>
    %14 = vector.shape_cast %5 : vector<1x4xf32> to vector<1x1x4xf32>
    %15 = arith.addf %13, %14 : vector<1x1x4xf32>
    %c0_18 = arith.constant 0 : index
    %c4_19 = arith.constant 4 : index
    %c0_20 = arith.constant 0 : index
    %16 = vector.load %arg3[%c0_18, %c4_19, %c0_20] : memref<1x8x128xf32, #tpu.memory_space<vmem>>, vector<1x1x4xf32>
    tpu.vector_store %arg3[%c0_18, %c4_19, %c0_20], %15 {strides = array<i32>} : memref<1x8x128xf32, #tpu.memory_space<vmem>>, vector<1x1x4xf32>,
    %c0_i32_21 = arith.constant 0 : i32
    %17 = arith.cmpi eq, %arg1, %c0_i32_21 : i32
    %18 = arith.extui %17 : i1 to i32
    %c0_i32_22 = arith.constant 0 : i32
    %19 = arith.cmpi ne, %18, %c0_i32_22 : i32
    scf.if %19 {
      %c0_23 = arith.constant 0 : index
      %c0_24 = arith.constant 0 : index
      %c0_25 = arith.constant 0 : index
      %20 = vector.load %arg3[%c0_23, %c0_24, %c0_25] : memref<1x8x128xf32, #tpu.memory_space<vmem>>, vector<1x8x128xf32>
      %cst_26 = arith.constant 6.250000e-02 : f32
      %21 = vector.broadcast %cst_26 : f32 to vector<1x8x128xf32>
      %22 = arith.mulf %20, %21 : vector<1x8x128xf32>
      %c0_27 = arith.constant 0 : index
      %c0_28 = arith.constant 0 : index
      %c0_29 = arith.constant 0 : index
      %23 = vector.load %arg3[%c0_27, %c0_28, %c0_29] : memref<1x8x128xf32, #tpu.memory_space<vmem>>, vector<1x8x128xf32>
      tpu.vector_store %arg3[%c0_27, %c0_28, %c0_29], %22 {strides = array<i32>} : memref<1x8x128xf32, #tpu.memory_space<vmem>>, vector<1x8x128xf32>,
      %cst_30 = arith.constant 1.000000e+00 : f32
      %24 = vector.broadcast %cst_30 : f32 to vector<1x1x1xf32>
      %c0_31 = arith.constant 0 : index
      %c4_32 = arith.constant 4 : index
      %c4_33 = arith.constant 4 : index
      %25 = vector.load %arg3[%c0_31, %c4_32, %c4_33] : memref<1x8x128xf32, #tpu.memory_space<vmem>>, vector<1x1x1xf32>
      tpu.vector_store %arg3[%c0_31, %c4_32, %c4_33], %24 {strides = array<i32>} : memref<1x8x128xf32, #tpu.memory_space<vmem>>, vector<1x1x1xf32>,
    } else {
    }
    return
  }
  func.func @transform_0(%arg0: i32, %arg1: i32) -> (i32, i32, i32) {
    %c0_i32 = arith.constant 0 : i32
    %c0_i32_0 = arith.constant 0 : i32
    return %arg0, %c0_i32, %arg1 : i32, i32, i32
  }
  func.func @transform_1(%arg0: i32, %arg1: i32) -> (i32, i32, i32) {
    %c0_i32 = arith.constant 0 : i32
    %c0_i32_0 = arith.constant 0 : i32
    %c0_i32_1 = arith.constant 0 : i32
    return %arg0, %c0_i32, %c0_i32_0 : i32, i32, i32
  }
}

</mosaic_0001>

<llo_original>
// kernel: tpu_custom_call.1
$region0: #{tpu_custom_call.1}
  #allocation0 [shape = 'u32[]', space=smem, size = 0x4, offset = 0x4, fixed_abs, tag = 'smem constant byte address 0x4 - core index']
  #allocation1 [shape = 'u32[72,128]{1,0:T(1,128)}', space=vmem, size = 0x9000, scoped, tag = 'internal scratch']
  %s0 = inlined_call_operand.hbm [shape: f32[2,4,16], index: 0, kind: input, shape index: {}]
  %s1 = inlined_call_operand.hbm [shape: f32[2,8,128], index: 1, kind: output, shape index: {}]
  %s2 = sld [smem:[#allocation0]]
  $region49: #{tpu_custom_call.1} parent=0
    _
  %s4 = ssub.s32 1, %s2
  %s5 = scalar_select 0, %s4, %s2
  $region1: #{tpu_custom_call.1} parent=0
    #allocation2 [shape = 'u8[4096]{0}', space=vmem, size = 0x1000, scoped, tag = 'input window, operand 0']
    #allocation3 [shape = 's32[2]{0}', space=sflag, size = 0x8, scoped, tag = 'scoped memory for tpu_custom_call.1']
    #allocation4 [shape = 's32[2]{0}', space=sflag, size = 0x8, scoped, tag = 'scoped memory for tpu_custom_call.1']
    #allocation5 [shape = 'u8[8192]{0}', space=vmem, size = 0x2000, scoped, tag = 'output window, operand 0']
    %6 = vsyncpa [#allocation3], 0
    %s7 = scalar_lea.sflag [#allocation3], 1
    %8 = vsyncpa %s7, 0
    %9 = vsyncpa [#allocation4], 0
    %s10 = scalar_lea.sflag [#allocation4], 1
    %11 = vsyncpa %s10, 0
    loop: start=0, step=1, limit=4
    $region2: #{tpu_custom_call.1} parent=1 // loop_pre_header
      _
    $region3: #{tpu_custom_call.1} parent=1 // loop_header
      %s13 = sphi 0, %s17
      %p14 = scmp.ge.s32.totalorder %s13, 4
      %s20 = sphi 0, %s32
      %s21 = sphi 0, %s28
      %s22 = sphi 0, %s20
      %s23 = sphi 0, %s21
      %s24 = sphi 0, %s22
      %s25 = sphi 0, %s23
      %s37 = sphi 0, %s39
      %s40 = sphi 0, %s37
      %s41 = sphi 0, %s40
      %s57 = sphi 0, %s41
      %s63 = sphi 0, %s65
      %s66 = sphi 0, %s63
      %s67 = sphi 0, %s66
      %s83 = sphi 0, %s67
    $region4: #{tpu_custom_call.1} parent=1 // loop_header_branch
      %16 = sbr.rel (%p14) target = $region8
    $region5: #{tpu_custom_call.1} parent=1 // loop_body
      %s18 = ssub.s32 %s13, 1
      %s19 = ssub.s32 %s13, 2
      %s26 = sadd.s32 1, %s21
      %p27 = scmp.ge.s32.totalorder %s26, 1
      %s28 = scalar_select %p27, 0, %s26
      %s29 = sadd.s32 1, %s20
      %s30 = scalar_select %p27, %s29, %s20
      %p31 = scmp.ge.s32.totalorder %s30, 2
      %s32 = scalar_select %p31, 0, %s30
      %s33 = ssub.s32 %s20, %s32
      %s34 = ssub.s32 %s21, %s28
      %s35 = sor.u32 %s33, %s34
      %p36 = scmp.eq.s32.totalorder %s35, 0
      %s38 = sadd.s32 %s37, 1
      %s39 = scalar_select %p36, %s37, %s38
      %p42 = pneg %p36
      %p43 = scmp.eq.s32.totalorder %s13, 1
      %p44 = por %p42, %p43
      %p45 = scmp.ne.s32.totalorder %s37, %s40
      %p46 = scmp.eq.s32.totalorder %s13, 0
      %p47 = por %p45, %p46
      %p48 = scmp.ne.s32.totalorder %s37, %s40
      %p49 = scmp.eq.s32.totalorder %s18, 1
      %p50 = por %p48, %p49
      %p51 = scmp.ne.s32.totalorder %s40, %s41
      %p52 = scmp.eq.s32.totalorder %s18, 0
      %p53 = por %p51, %p52
      %p54 = scmp.ne.s32.totalorder %s40, %s41
      %p55 = scmp.eq.s32.totalorder %s19, 1
      %p56 = por %p54, %p55
      %p58 = scmp.ne.s32.totalorder %s41, %s57
      %p59 = scmp.eq.s32.totalorder %s19, 0
      %p60 = por %p58, %p59
      %s61 = ssub.s32 %s20, %s32
      %p62 = scmp.eq.s32.totalorder %s61, 0
      %s64 = sadd.s32 %s63, 1
      %s65 = scalar_select %p62, %s63, %s64
      %p68 = pneg %p62
      %p69 = scmp.eq.s32.totalorder %s13, 1
      %p70 = por %p68, %p69
      %p71 = scmp.ne.s32.totalorder %s63, %s66
      %p72 = scmp.eq.s32.totalorder %s13, 0
      %p73 = por %p71, %p72
      %p74 = scmp.ne.s32.totalorder %s63, %s66
      %p75 = scmp.eq.s32.totalorder %s18, 1
      %p76 = por %p74, %p75
      %p77 = scmp.ne.s32.totalorder %s66, %s67
      %p78 = scmp.eq.s32.totalorder %s18, 0
      %p79 = por %p77, %p78
      %p80 = scmp.ne.s32.totalorder %s66, %s67
      %p81 = scmp.eq.s32.totalorder %s19, 1
      %p82 = por %p80, %p81
      %p84 = scmp.ne.s32.totalorder %s67, %s83
      %p85 = scmp.eq.s32.totalorder %s19, 0
      %p86 = por %p84, %p85
      %p87 = scmp.le.s32.totalorder 1, %s13
      %p88 = scmp.lt.s32.totalorder %s13, 3
      %p89 = pnand %p87, %p88
      %p90 = pneg %p89
      // Predicated region
      $region9: #{tpu_custom_call.1} parent=5 // pred_check
        _
      $region10: #{tpu_custom_call.1} parent=5 // pred_check_branch
        %92 = sbr.rel (%p89) target = $region12
      $region11: #{tpu_custom_call.1} parent=5 // pred_region
        %s93 = ssub.s32 %s13, 1
      $region12: #{tpu_custom_call.1} parent=5 // pred_fallthru
        _
      %p94 = scmp.lt.s32.totalorder %s13, 2
      // Predicated region
      $region13: #{tpu_custom_call.1} parent=5 // pred_check
        %p95 = pneg %p94
      $region14: #{tpu_custom_call.1} parent=5 // pred_check_branch
        %97 = sbr.rel (%p95) target = $region16
      $region15: #{tpu_custom_call.1} parent=5 // pred_region
        // Predicated region
        $region17: #{tpu_custom_call.1} parent=15 // pred_check
          %p98 = pneg %p47
        $region18: #{tpu_custom_call.1} parent=15 // pred_check_branch
          %100 = sbr.rel (%p98) target = $region20
        $region19: #{tpu_custom_call.1} parent=15 // pred_region
          %s101 = sand.u32 %s37, 1
          %s102 = scalar_lea.sflag [#allocation3], %s101
          %s103 = sand.u32 %s37, 1
          %s104 = smul.addr %s103, 4
          %s105 = scalar_lea.vmem [#allocation2], %s104
          %107 = vsyncadd %s102, 0
          %s108 = sadd.s32 %s21, %s20
          %s109 = smul.addr %s108, 4
          %s110 = scalar_lea.hbm %s0, %s109
          %s112 = sshll.u32 %s110, 4
          %s113 = int_to_ptr.hbm [resolvable:$true] %s112
          %s114 = sshll.u32 %s105, 4
          %s115 = int_to_ptr.vmem [resolvable:$true] %s114
          %117 = dma.hbm_to_vmem [thread:$0]  %s113, 64, %s115, %s102
        $region20: #{tpu_custom_call.1} parent=15 // pred_fallthru
          _
      $region16: #{tpu_custom_call.1} parent=5 // pred_fallthru
        _
      %p118 = scmp.le.s32.totalorder 1, %s13
      %p119 = scmp.lt.s32.totalorder %s13, 3
      %p120 = pnand %p118, %p119
      %p121 = pneg %p120
      // Predicated region
      $region21: #{tpu_custom_call.1} parent=5 // pred_check
        _
      $region22: #{tpu_custom_call.1} parent=5 // pred_check_branch
        %123 = sbr.rel (%p120) target = $region24
      $region23: #{tpu_custom_call.1} parent=5 // pred_region
        %s124 = ssub.s32 %s13, 1
        %s125 = sand.u32 %s40, 1
        %s126 = scalar_lea.sflag [#allocation3], %s125
        %s127 = sand.u32 %s40, 1
        %s128 = smul.addr %s127, 4
        %s129 = scalar_lea.vmem [#allocation2], %s128
        // Predicated region
        $region25: #{tpu_custom_call.1} parent=23 // pred_check
          %p130 = pneg %p53
        $region26: #{tpu_custom_call.1} parent=23 // pred_check_branch
          %132 = sbr.rel (%p130) target = $region28
        $region27: #{tpu_custom_call.1} parent=23 // pred_region
          %134 = dma.done %s126, 64
        $region28: #{tpu_custom_call.1} parent=23 // pred_fallthru
          _
        %s135 = sand.u32 %s40, 1
        %s136 = scalar_lea.sflag [#allocation3], %s135
        %s137 = sand.u32 %s40, 1
        %s138 = smul.addr %s137, 4
        %s139 = scalar_lea.vmem [#allocation2], %s138
        %p140 = pneg %p53
        %p141 = pneg %p50
        %p142 = pneg %p79
        %p143 = pneg %p76
        %s144 = sand.u32 %s66, 1
        %s145 = scalar_lea.sflag [#allocation4], %s144
        %s146 = sand.u32 %s66, 1
        %s147 = smul.addr %s146, 8
        %s148 = scalar_lea.vmem [#allocation5], %s147
        %p149 = scmp.eq.s32.totalorder %s23, 0
        // Predicated region
        $region29: #{tpu_custom_call.1} parent=23 // pred_check
          %p150 = pneg %p149
        $region30: #{tpu_custom_call.1} parent=23 // pred_check_branch
          %152 = sbr.rel (%p150) target = $region32
        $region31: #{tpu_custom_call.1} parent=23 // pred_region
          %153 = vst [vmem:[%s148] sm:$0xff] 0.0
        $region32: #{tpu_custom_call.1} parent=23 // pred_fallthru
          _
        %v154 = vld [vmem:[%s129] sm:$0xf]
        %vm155 = vcmask 130048
        %v157 = vsel %vm155, %v154, 0
        %159 = vmatpush.xpose.msra.mxu0 0.0
        %160 = vmatpush.xpose.msra.mxu0 0.0
        %161 = vmatpush.xpose.msra.mxu0 0.0
        %162 = vmatpush.xpose.msra.mxu0 0.0
        %163 = vmatpush.xpose.msra.mxu0 0.0
        %164 = vmatpush.xpose.msra.mxu0 0.0
        %165 = vmatpush.xpose.msra.mxu0 0.0
        %166 = vmatpush.xpose.msra.mxu0 0.0
        %167 = vmatpush.xpose.msra.mxu0 0.0
        %168 = vmatpush.xpose.msra.mxu0 0.0
        %169 = vmatpush.xpose.msra.mxu0 0.0
        %170 = vmatpush.xpose.msra.mxu0 0.0
        %171 = vmatpush.xpose.msra.mxu0 0.0
        %172 = vmatpush.xpose.msra.mxu0 0.0
        %173 = vmatpush.xpose.msra.mxu0 0.0
        %174 = vmatpush.xpose.msra.mxu0 %v157
        %175 = vmatmul.f32.gmra.mxu0 %v157
        %v176 = vpop.f32.mrf.mxu0
        %v177 = vadd.f32 0.0, %v176
        %178 = vdwg.mxu0
        %vm179 = vcmask 125952
        %v180 = vsel %vm179, %v154, 0.0
        %181 = vadd.xlane.f32.xlu0 %v180
        %v182 = vpop.xlane.xlu0 %181
        %v183 = vld [vmem:[%s148] sm:$0xf]
        %v184 = vadd.f32 %v183, %v177
        %vm185 = vcmask 27648
        %186 = vst.msk [vmem:[%s148] sm:$0xf] %vm185, %v184
        %v187 = vld [vmem:[%s148] sm:$0xf]
        %v188 = vadd.f32 %v187, %v182
        %vm189 = vcmask 35872
        %190 = vst.msk [vmem:[%s148] sm:$0xf] %vm189, %v188
        %v191 = vld [vmem:[%s148 + $0x4] sm:$0x1]
        %v193 = vlaneseq
        %v194 = vand.u32 %v193, 127
        %v195 = vperm.slane %v182, %v194
        %v197 = vadd.f32 %v191, %v195
        %vm198 = vcmask 24576
        %199 = vst.msk [vmem:[%s148 + $0x4] sm:$0x1] %vm198, %v197
        // Predicated region
        $region33: #{tpu_custom_call.1} parent=23 // pred_check
          %p200 = pneg %p149
        $region34: #{tpu_custom_call.1} parent=23 // pred_check_branch
          %202 = sbr.rel (%p200) target = $region36
        $region35: #{tpu_custom_call.1} parent=23 // pred_region
          %v203 = vld [vmem:[%s148] sm:$0xff]
          %v204 = vmul.f32 %v203, 0.0625
          %205 = vst [vmem:[%s148] sm:$0xff] %v204
          %vm206 = vcmask 32800
          %207 = vst.msk [vmem:[%s148 + $0x4] sm:$0x1] %vm206, 1.0
        $region36: #{tpu_custom_call.1} parent=23 // pred_fallthru
          _
        %s208 = sand.u32 %s66, 1
        %s209 = scalar_lea.sflag [#allocation4], %s208
        %s210 = sand.u32 %s66, 1
        %s211 = smul.addr %s210, 8
        %s212 = scalar_lea.vmem [#allocation5], %s211
        // Predicated region
        $region37: #{tpu_custom_call.1} parent=23 // pred_check
          %p213 = pneg %p76
        $region38: #{tpu_custom_call.1} parent=23 // pred_check_branch
          %215 = sbr.rel (%p213) target = $region40
        $region39: #{tpu_custom_call.1} parent=23 // pred_region
          %217 = vsyncadd %s209, 0
          %s218 = smul.addr %s22, 8
          %s219 = scalar_lea.hbm %s1, %s218
          %s221 = sshll.u32 %s212, 4
          %s222 = int_to_ptr.vmem [resolvable:$true] %s221
          %s223 = sshll.u32 %s219, 4
          %s224 = int_to_ptr.hbm [resolvable:$true] %s223
          %226 = dma.vmem_to_hbm [thread:$0]  %s222, 128, %s224, %s209
        $region40: #{tpu_custom_call.1} parent=23 // pred_fallthru
          _
      $region24: #{tpu_custom_call.1} parent=5 // pred_fallthru
        _
      %p227 = scmp.le.s32.totalorder 2, %s13
      // Predicated region
      $region41: #{tpu_custom_call.1} parent=5 // pred_check
        %p228 = pneg %p227
      $region42: #{tpu_custom_call.1} parent=5 // pred_check_branch
        %230 = sbr.rel (%p228) target = $region44
      $region43: #{tpu_custom_call.1} parent=5 // pred_region
        %s231 = ssub.s32 %s13, 2
        // Predicated region
        $region45: #{tpu_custom_call.1} parent=43 // pred_check
          %p232 = pneg %p82
        $region46: #{tpu_custom_call.1} parent=43 // pred_check_branch
          %234 = sbr.rel (%p232) target = $region48
        $region47: #{tpu_custom_call.1} parent=43 // pred_region
          %s235 = sand.u32 %s67, 1
          %s236 = scalar_lea.sflag [#allocation4], %s235
          %s237 = sand.u32 %s67, 1
          %s238 = smul.addr %s237, 8
          %s239 = scalar_lea.vmem [#allocation5], %s238
          %241 = dma.done %s236, 128
        $region48: #{tpu_custom_call.1} parent=43 // pred_fallthru
          _
      $region44: #{tpu_custom_call.1} parent=5 // pred_fallthru
        _
    $region6: #{tpu_custom_call.1} parent=1 // loop_footer
      %s17 = sadd.s32 1, %s13
    $region7: #{tpu_custom_call.1} parent=1 // loop_footer_branch
      %12 = sbr.rel target = $region3
    $region8: #{tpu_custom_call.1} parent=1 // loop_exit
      _
    %242 = vsyncpa [#allocation3], 1
    %s243 = scalar_lea.sflag [#allocation3], 1
    %244 = vsyncpa %s243, 1
    %245 = vsyncpa [#allocation4], 1
    %s246 = scalar_lea.sflag [#allocation4], 1
    %247 = vsyncpa %s246, 1

</llo_original>
